<compile_context>
chip_gen: v7x
topology: tpu7x:2x2x1
jax: 0.10.0
libtpu: 0.0.40
codegen_flags: <defaults>
</compile_context>

<pallas_src>
import functools

import jax
import jax.numpy as jnp
from jax.experimental import pallas as pl
from jax.experimental.pallas import tpu as pltpu


def _round_up(x, m):
    return (x + m - 1) // m * m


def _dnet_kernel(t_ref, w_ref, b_ref, o_ref, xs_ref, *,
                 k, s, Wz, Wo, Lout, Lout_p, cin_p, n_spatial,
                 norm, negative_slope, eps):
    # t_ref : (1, s*s, Cin_p, Tlast) bf16  stride-phase padded input (one image)
    # w_ref : (TC, k*k*Cin_p)        bf16  folded weights for one Cout tile
    # b_ref : (TC, 1)                f32   conv bias (only used when norm=False)
    # o_ref : (1, TC, Lout_p)        bf16  lane-dense output tile
    # xs_ref: (k*k*Cin_p, Lout_p)    bf16  stacked-tap operand (built at c==0, reused)

    @pl.when(pl.program_id(1) == 0)
    def _build_stacked():
        # Realign each tap's lane-slice once into an aligned VMEM slab; the taps
        # become the (major part of the) MXU contraction dimension.
        for di in range(k):
            for dj in range(k):
                tap = di * k + dj
                phase = (di % s) * s + (dj % s)
                off = (di // s) * Wz + (dj // s)
                xs_ref[pl.ds(tap * cin_p, cin_p), :] = (
                    t_ref[0, phase, :, pl.ds(off, Lout_p)])

    # Single MXU matmul: conv taps folded into K, f32 accumulation.
    acc = jnp.dot(w_ref[...], xs_ref[...], preferred_element_type=jnp.float32)

    if norm:
        # Bias is an exact no-op under InstanceNorm (mean-subtracted) -> skipped.
        col = jax.lax.broadcasted_iota(jnp.int32, (1, Lout_p), 1)
        mask = jnp.logical_and(col % Wz < Wo, col < Lout).astype(jnp.float32)
        yv = acc * mask                                       # zero the pad columns
        s1 = jnp.sum(yv, axis=1, keepdims=True)               # lane reduce (XLU)
        s2 = jnp.sum(yv * acc, axis=1, keepdims=True)         # == sum(mask * acc^2)
        inv_n = 1.0 / n_spatial
        mean = s1 * inv_n
        var = jnp.maximum(s2 * inv_n - mean * mean, 0.0)      # biased var, f32
        y = (acc - mean) * jax.lax.rsqrt(var + eps)           # rsqrt on EUP
    else:
        y = acc + b_ref[...]

    # LeakyReLU(negative_slope)
    y = jnp.where(y >= 0, y, negative_slope * y)
    o_ref[0] = y.astype(o_ref.dtype)


def dnet_conv_block(x, weight, bias, *, stride=2, norm=True,
                    negative_slope=0.2, eps=1e-5, compute_dtype=jnp.bfloat16):
    """x: (N, Cin, H, W); weight: (Cout, Cin, k, k); bias: (Cout,). Returns NCHW (bf16)."""
    N, Cin, H, W = x.shape
    Cout, _, k, _ = weight.shape
    s = stride
    p = 1
    Ho = (H + 2 * p - k) // s + 1
    Wo = (W + 2 * p - k) // s + 1
    a = (k - 1) // s                       # extra phase rows/cols a tap can reach
    R = Ho + a                             # phase-image rows
    Wz = Wo + a                            # phase-image cols (= row pitch of flat axis)
    Lout = Ho * Wz                         # flat spatial length
    Lout_p = _round_up(Lout, 128)          # lane-padded -> unmasked vst on the store
    max_off = a * Wz + a
    Tlast = _round_up(max_off + Lout_p, 128)

    Cin_p = _round_up(Cin, 8)
    Cout_p8 = _round_up(Cout, 8)
    TC = min(128, Cout_p8)                 # Cout tile: bounds VMEM, deepens pipeline
    Cout_p = _round_up(Cout_p8, TC)
    n_ct = Cout_p // TC
    Ktot = k * k * Cin_p                   # folded contraction depth

    # ---- stride-phase space-to-depth of the padded input (no im2col blow-up) ----
    xb = x.astype(compute_dtype)
    pad_b = max(0, s * R - H - p)
    pad_r = max(0, s * Wz - W - p)
    xp = jnp.pad(xb, ((0, 0), (0, 0), (p, pad_b), (p, pad_r)))
    xp = xp[:, :, :s * R, :s * Wz]
    z = xp.reshape(N, Cin, R, s, Wz, s).transpose(0, 3, 5, 1, 2, 4)   # (N,s,s,Cin,R,Wz)
    z = z.reshape(N, s * s, Cin, R * Wz)
    z = jnp.pad(z, ((0, 0), (0, 0), (0, Cin_p - Cin), (0, Tlast - R * Wz)))

    # ---- weights folded to (Cout_p, k*k*Cin_p) matching the stacked-tap operand ----
    wt = weight.astype(compute_dtype).transpose(0, 2, 3, 1)           # (Cout, k, k, Cin)
    wt = jnp.pad(wt, ((0, Cout_p - Cout), (0, 0), (0, 0), (0, Cin_p - Cin)))
    wt = wt.reshape(Cout_p, Ktot)
    bm = jnp.pad(bias.astype(jnp.float32), (0, Cout_p - Cout)).reshape(Cout_p, 1)

    kernel = functools.partial(
        _dnet_kernel, k=k, s=s, Wz=Wz, Wo=Wo, Lout=Lout, Lout_p=Lout_p,
        cin_p=Cin_p, n_spatial=float(Ho * Wo), norm=norm,
        negative_slope=negative_slope, eps=eps)

    # VMEM budget from the actual block sizes (double-buffered ins/outs + scratch).
    esz = jnp.dtype(compute_dtype).itemsize
    needed = (2 * s * s * Cin_p * Tlast * esz          # phase-image block
              + 2 * TC * Ktot * esz                    # weight tile
              + 2 * TC * 4                             # bias tile
              + 2 * TC * Lout_p * esz                  # output tile
              + Ktot * Lout_p * esz)                   # stacked-tap scratch
    vmem_limit = int(min(max(needed * 5 // 4 + (2 << 20), 16 << 20), 64 << 20))

    out = pl.pallas_call(
        kernel,
        out_shape=jax.ShapeDtypeStruct((N, Cout_p, Lout_p), compute_dtype),
        grid_spec=pltpu.PrefetchScalarGridSpec(
            num_scalar_prefetch=0,
            grid=(N, n_ct),
            in_specs=[
                pl.BlockSpec((1, s * s, Cin_p, Tlast), lambda n, c: (n, 0, 0, 0)),
                pl.BlockSpec((TC, Ktot), lambda n, c: (c, 0)),
                pl.BlockSpec((TC, 1), lambda n, c: (c, 0)),
            ],
            out_specs=pl.BlockSpec((1, TC, Lout_p), lambda n, c: (n, c, 0)),
            scratch_shapes=[pltpu.VMEM((Ktot, Lout_p), compute_dtype)],
        ),
        compiler_params=pltpu.CompilerParams(
            # Cout axis must stay sequential on one core ("arbitrary"): the
            # stacked-tap scratch built at c==0 is reused across Cout tiles.
            dimension_semantics=("parallel", "arbitrary"),
            vmem_limit_bytes=vmem_limit),
    )(z, wt, bm)

    # (N, Cout_p, Lout_p) -> NCHW (drop lane-pitch / lane-pad / channel padding).
    out = out[:, :Cout, :Lout].reshape(N, Cout, Ho, Wz)[:, :, :, :Wo]
    return out


def _reference(x, weight, bias, *, stride=2, norm=True, negative_slope=0.2, eps=1e-5):
    y = jax.lax.conv_general_dilated(
        x, weight, window_strides=(stride, stride), padding=((1, 1), (1, 1)),
        dimension_numbers=("NCHW", "OIHW", "NCHW"))
    y = y + bias.reshape(1, -1, 1, 1)
    if norm:
        mean = jnp.mean(y, axis=(2, 3), keepdims=True)
        var = jnp.mean((y - mean) ** 2, axis=(2, 3), keepdims=True)
        y = (y - mean) * jax.lax.rsqrt(var + eps)
    return jnp.where(y >= 0, y, negative_slope * y)


if __name__ == "__main__":
    key = jax.random.PRNGKey(0)
    kx, kw, kb = jax.random.split(key, 3)

    N, Cin, H, W = 2, 4, 16, 16
    Cout = 8

    x = jax.random.normal(kx, (N, Cin, H, W), dtype=jnp.float32)
    weight = 0.1 * jax.random.normal(kw, (Cout, Cin, 4, 4), dtype=jnp.float32)
    bias = 0.1 * jax.random.normal(kb, (Cout,), dtype=jnp.float32)

    # Reference at matched operand precision (kernel does bf16 MXU, f32 accumulate,
    # bf16 output store).
    xr = x.astype(jnp.bfloat16).astype(jnp.float32)
    wr = weight.astype(jnp.bfloat16).astype(jnp.float32)

    fwd_norm = jax.jit(functools.partial(dnet_conv_block, stride=2, norm=True))
    fwd_nonorm = jax.jit(functools.partial(dnet_conv_block, stride=2, norm=False))

    out = jax.block_until_ready(fwd_norm(x, weight, bias))
    ref = _reference(xr, wr, bias, stride=2, norm=True)
    assert out.shape == (N, Cout, 8, 8), out.shape
    err = float(jnp.max(jnp.abs(out.astype(jnp.float32) - ref)))
    assert err < 5e-2, err   # tolerance covers bf16 output quantization

    out2 = jax.block_until_ready(fwd_nonorm(x, weight, bias))
    ref2 = _reference(xr, wr, bias, stride=2, norm=False)
    err2 = float(jnp.max(jnp.abs(out2.astype(jnp.float32) - ref2)))
    assert err2 < 5e-2, err2

    print("KERNEL_OK")
</pallas_src>

<mosaic_0001>
module attributes {stable_mosaic.version = 11 : i64} {
  func.func @_dnet_kernel(%arg0: i32, %arg1: i32, %arg2: memref<1x4x8x256xbf16, #tpu.memory_space<vmem>>, %arg3: memref<8x128xbf16, #tpu.memory_space<vmem>>, %arg4: memref<8x1xf32, #tpu.memory_space<vmem>>, %arg5: memref<1x8x128xbf16, #tpu.memory_space<vmem>>, %arg6: memref<128x128xbf16, #tpu.memory_space<vmem>>) attributes {dimension_semantics = [#tpu.dimension_semantics<parallel>, #tpu.dimension_semantics<arbitrary>], iteration_bounds = array<i64: 2, 1>, scalar_prefetch = 0 : i64, scratch_operands = 1 : i64, tpu.core_type = #tpu.core_type<tc>, window_params = [{transform_indices = @transform_0, window_bounds = array<i64: 1, 4, 8, 256>}, {transform_indices = @transform_1, window_bounds = array<i64: 8, 128>}, {transform_indices = @transform_2, window_bounds = array<i64: 8, 1>}, {transform_indices = @transform_3, window_bounds = array<i64: 1, 8, 128>}]} {
    %c0_i32 = arith.constant 0 : i32
    %0 = arith.cmpi eq, %arg1, %c0_i32 : i32
    %1 = arith.extui %0 : i1 to i32
    %c0_i32_0 = arith.constant 0 : i32
    %2 = arith.cmpi ne, %1, %c0_i32_0 : i32
    scf.if %2 {
      %c0_19 = arith.constant 0 : index
      %c0_20 = arith.constant 0 : index
      %c0_21 = arith.constant 0 : index
      %c0_22 = arith.constant 0 : index
      %61 = vector.load %arg2[%c0_19, %c0_20, %c0_21, %c0_22] : memref<1x4x8x256xbf16, #tpu.memory_space<vmem>>, vector<1x1x8x128xbf16>
      %62 = vector.shape_cast %61 : vector<1x1x8x128xbf16> to vector<8x128xbf16>
      %c0_23 = arith.constant 0 : index
      %c0_24 = arith.constant 0 : index
      %63 = vector.load %arg6[%c0_23, %c0_24] : memref<128x128xbf16, #tpu.memory_space<vmem>>, vector<8x128xbf16>
      tpu.vector_store %arg6[%c0_23, %c0_24], %62 {strides = array<i32>} : memref<128x128xbf16, #tpu.memory_space<vmem>>, vector<8x128xbf16>,
      %c0_25 = arith.constant 0 : index
      %c1 = arith.constant 1 : index
      %c0_26 = arith.constant 0 : index
      %c0_27 = arith.constant 0 : index
      %64 = vector.load %arg2[%c0_25, %c1, %c0_26, %c0_27] : memref<1x4x8x256xbf16, #tpu.memory_space<vmem>>, vector<1x1x8x128xbf16>
      %65 = vector.shape_cast %64 : vector<1x1x8x128xbf16> to vector<8x128xbf16>
      %c8 = arith.constant 8 : index
      %c0_28 = arith.constant 0 : index
      %66 = vector.load %arg6[%c8, %c0_28] : memref<128x128xbf16, #tpu.memory_space<vmem>>, vector<8x128xbf16>
      tpu.vector_store %arg6[%c8, %c0_28], %65 {strides = array<i32>} : memref<128x128xbf16, #tpu.memory_space<vmem>>, vector<8x128xbf16>,
      %c0_29 = arith.constant 0 : index
      %c0_30 = arith.constant 0 : index
      %c0_31 = arith.constant 0 : index
      %c1_32 = arith.constant 1 : index
      %67 = vector.load %arg2[%c0_29, %c0_30, %c0_31, %c1_32] : memref<1x4x8x256xbf16, #tpu.memory_space<vmem>>, vector<1x1x8x128xbf16>
      %68 = vector.shape_cast %67 : vector<1x1x8x128xbf16> to vector<8x128xbf16>
      %c16 = arith.constant 16 : index
      %c0_33 = arith.constant 0 : index
      %69 = vector.load %arg6[%c16, %c0_33] : memref<128x128xbf16, #tpu.memory_space<vmem>>, vector<8x128xbf16>
      tpu.vector_store %arg6[%c16, %c0_33], %68 {strides = array<i32>} : memref<128x128xbf16, #tpu.memory_space<vmem>>, vector<8x128xbf16>,
      %c0_34 = arith.constant 0 : index
      %c1_35 = arith.constant 1 : index
      %c0_36 = arith.constant 0 : index
      %c1_37 = arith.constant 1 : index
      %70 = vector.load %arg2[%c0_34, %c1_35, %c0_36, %c1_37] : memref<1x4x8x256xbf16, #tpu.memory_space<vmem>>, vector<1x1x8x128xbf16>
      %71 = vector.shape_cast %70 : vector<1x1x8x128xbf16> to vector<8x128xbf16>
      %c24 = arith.constant 24 : index
      %c0_38 = arith.constant 0 : index
      %72 = vector.load %arg6[%c24, %c0_38] : memref<128x128xbf16, #tpu.memory_space<vmem>>, vector<8x128xbf16>
      tpu.vector_store %arg6[%c24, %c0_38], %71 {strides = array<i32>} : memref<128x128xbf16, #tpu.memory_space<vmem>>, vector<8x128xbf16>,
      %c0_39 = arith.constant 0 : index
      %c2 = arith.constant 2 : index
      %c0_40 = arith.constant 0 : index
      %c0_41 = arith.constant 0 : index
      %73 = vector.load %arg2[%c0_39, %c2, %c0_40, %c0_41] : memref<1x4x8x256xbf16, #tpu.memory_space<vmem>>, vector<1x1x8x128xbf16>
      %74 = vector.shape_cast %73 : vector<1x1x8x128xbf16> to vector<8x128xbf16>
      %c32 = arith.constant 32 : index
      %c0_42 = arith.constant 0 : index
      %75 = vector.load %arg6[%c32, %c0_42] : memref<128x128xbf16, #tpu.memory_space<vmem>>, vector<8x128xbf16>
      tpu.vector_store %arg6[%c32, %c0_42], %74 {strides = array<i32>} : memref<128x128xbf16, #tpu.memory_space<vmem>>, vector<8x128xbf16>,
      %c0_43 = arith.constant 0 : index
      %c3 = arith.constant 3 : index
      %c0_44 = arith.constant 0 : index
      %c0_45 = arith.constant 0 : index
      %76 = vector.load %arg2[%c0_43, %c3, %c0_44, %c0_45] : memref<1x4x8x256xbf16, #tpu.memory_space<vmem>>, vector<1x1x8x128xbf16>
      %77 = vector.shape_cast %76 : vector<1x1x8x128xbf16> to vector<8x128xbf16>
      %c40 = arith.constant 40 : index
      %c0_46 = arith.constant 0 : index
      %78 = vector.load %arg6[%c40, %c0_46] : memref<128x128xbf16, #tpu.memory_space<vmem>>, vector<8x128xbf16>
      tpu.vector_store %arg6[%c40, %c0_46], %77 {strides = array<i32>} : memref<128x128xbf16, #tpu.memory_space<vmem>>, vector<8x128xbf16>,
      %c0_47 = arith.constant 0 : index
      %c2_48 = arith.constant 2 : index
      %c0_49 = arith.constant 0 : index
      %c1_50 = arith.constant 1 : index
      %79 = vector.load %arg2[%c0_47, %c2_48, %c0_49, %c1_50] : memref<1x4x8x256xbf16, #tpu.memory_space<vmem>>, vector<1x1x8x128xbf16>
      %80 = vector.shape_cast %79 : vector<1x1x8x128xbf16> to vector<8x128xbf16>
      %c48 = arith.constant 48 : index
      %c0_51 = arith.constant 0 : index
      %81 = vector.load %arg6[%c48, %c0_51] : memref<128x128xbf16, #tpu.memory_space<vmem>>, vector<8x128xbf16>
      tpu.vector_store %arg6[%c48, %c0_51], %80 {strides = array<i32>} : memref<128x128xbf16, #tpu.memory_space<vmem>>, vector<8x128xbf16>,
      %c0_52 = arith.constant 0 : index
      %c3_53 = arith.constant 3 : index
      %c0_54 = arith.constant 0 : index
      %c1_55 = arith.constant 1 : index
      %82 = vector.load %arg2[%c0_52, %c3_53, %c0_54, %c1_55] : memref<1x4x8x256xbf16, #tpu.memory_space<vmem>>, vector<1x1x8x128xbf16>
      %83 = vector.shape_cast %82 : vector<1x1x8x128xbf16> to vector<8x128xbf16>
      %c56 = arith.constant 56 : index
      %c0_56 = arith.constant 0 : index
      %84 = vector.load %arg6[%c56, %c0_56] : memref<128x128xbf16, #tpu.memory_space<vmem>>, vector<8x128xbf16>
      tpu.vector_store %arg6[%c56, %c0_56], %83 {strides = array<i32>} : memref<128x128xbf16, #tpu.memory_space<vmem>>, vector<8x128xbf16>,
      %c0_57 = arith.constant 0 : index
      %c0_58 = arith.constant 0 : index
      %c0_59 = arith.constant 0 : index
      %c9 = arith.constant 9 : index
      %85 = vector.load %arg2[%c0_57, %c0_58, %c0_59, %c9] : memref<1x4x8x256xbf16, #tpu.memory_space<vmem>>, vector<1x1x8x128xbf16>
      %86 = vector.shape_cast %85 : vector<1x1x8x128xbf16> to vector<8x128xbf16>
      %c64 = arith.constant 64 : index
      %c0_60 = arith.constant 0 : index
      %87 = vector.load %arg6[%c64, %c0_60] : memref<128x128xbf16, #tpu.memory_space<vmem>>, vector<8x128xbf16>
      tpu.vector_store %arg6[%c64, %c0_60], %86 {strides = array<i32>} : memref<128x128xbf16, #tpu.memory_space<vmem>>, vector<8x128xbf16>,
      %c0_61 = arith.constant 0 : index
      %c1_62 = arith.constant 1 : index
      %c0_63 = arith.constant 0 : index
      %c9_64 = arith.constant 9 : index
      %88 = vector.load %arg2[%c0_61, %c1_62, %c0_63, %c9_64] : memref<1x4x8x256xbf16, #tpu.memory_space<vmem>>, vector<1x1x8x128xbf16>
      %89 = vector.shape_cast %88 : vector<1x1x8x128xbf16> to vector<8x128xbf16>
      %c72 = arith.constant 72 : index
      %c0_65 = arith.constant 0 : index
      %90 = vector.load %arg6[%c72, %c0_65] : memref<128x128xbf16, #tpu.memory_space<vmem>>, vector<8x128xbf16>
      tpu.vector_store %arg6[%c72, %c0_65], %89 {strides = array<i32>} : memref<128x128xbf16, #tpu.memory_space<vmem>>, vector<8x128xbf16>,
      %c0_66 = arith.constant 0 : index
      %c0_67 = arith.constant 0 : index
      %c0_68 = arith.constant 0 : index
      %c10 = arith.constant 10 : index
      %91 = vector.load %arg2[%c0_66, %c0_67, %c0_68, %c10] : memref<1x4x8x256xbf16, #tpu.memory_space<vmem>>, vector<1x1x8x128xbf16>
      %92 = vector.shape_cast %91 : vector<1x1x8x128xbf16> to vector<8x128xbf16>
      %c80 = arith.constant 80 : index
      %c0_69 = arith.constant 0 : index
      %93 = vector.load %arg6[%c80, %c0_69] : memref<128x128xbf16, #tpu.memory_space<vmem>>, vector<8x128xbf16>
      tpu.vector_store %arg6[%c80, %c0_69], %92 {strides = array<i32>} : memref<128x128xbf16, #tpu.memory_space<vmem>>, vector<8x128xbf16>,
      %c0_70 = arith.constant 0 : index
      %c1_71 = arith.constant 1 : index
      %c0_72 = arith.constant 0 : index
      %c10_73 = arith.constant 10 : index
      %94 = vector.load %arg2[%c0_70, %c1_71, %c0_72, %c10_73] : memref<1x4x8x256xbf16, #tpu.memory_space<vmem>>, vector<1x1x8x128xbf16>
      %95 = vector.shape_cast %94 : vector<1x1x8x128xbf16> to vector<8x128xbf16>
      %c88 = arith.constant 88 : index
      %c0_74 = arith.constant 0 : index
      %96 = vector.load %arg6[%c88, %c0_74] : memref<128x128xbf16, #tpu.memory_space<vmem>>, vector<8x128xbf16>
      tpu.vector_store %arg6[%c88, %c0_74], %95 {strides = array<i32>} : memref<128x128xbf16, #tpu.memory_space<vmem>>, vector<8x128xbf16>,
      %c0_75 = arith.constant 0 : index
      %c2_76 = arith.constant 2 : index
      %c0_77 = arith.constant 0 : index
      %c9_78 = arith.constant 9 : index
      %97 = vector.load %arg2[%c0_75, %c2_76, %c0_77, %c9_78] : memref<1x4x8x256xbf16, #tpu.memory_space<vmem>>, vector<1x1x8x128xbf16>
      %98 = vector.shape_cast %97 : vector<1x1x8x128xbf16> to vector<8x128xbf16>
      %c96 = arith.constant 96 : index
      %c0_79 = arith.constant 0 : index
      %99 = vector.load %arg6[%c96, %c0_79] : memref<128x128xbf16, #tpu.memory_space<vmem>>, vector<8x128xbf16>
      tpu.vector_store %arg6[%c96, %c0_79], %98 {strides = array<i32>} : memref<128x128xbf16, #tpu.memory_space<vmem>>, vector<8x128xbf16>,
      %c0_80 = arith.constant 0 : index
      %c3_81 = arith.constant 3 : index
      %c0_82 = arith.constant 0 : index
      %c9_83 = arith.constant 9 : index
      %100 = vector.load %arg2[%c0_80, %c3_81, %c0_82, %c9_83] : memref<1x4x8x256xbf16, #tpu.memory_space<vmem>>, vector<1x1x8x128xbf16>
      %101 = vector.shape_cast %100 : vector<1x1x8x128xbf16> to vector<8x128xbf16>
      %c104 = arith.constant 104 : index
      %c0_84 = arith.constant 0 : index
      %102 = vector.load %arg6[%c104, %c0_84] : memref<128x128xbf16, #tpu.memory_space<vmem>>, vector<8x128xbf16>
      tpu.vector_store %arg6[%c104, %c0_84], %101 {strides = array<i32>} : memref<128x128xbf16, #tpu.memory_space<vmem>>, vector<8x128xbf16>,
      %c0_85 = arith.constant 0 : index
      %c2_86 = arith.constant 2 : index
      %c0_87 = arith.constant 0 : index
      %c10_88 = arith.constant 10 : index
      %103 = vector.load %arg2[%c0_85, %c2_86, %c0_87, %c10_88] : memref<1x4x8x256xbf16, #tpu.memory_space<vmem>>, vector<1x1x8x128xbf16>
      %104 = vector.shape_cast %103 : vector<1x1x8x128xbf16> to vector<8x128xbf16>
      %c112 = arith.constant 112 : index
      %c0_89 = arith.constant 0 : index
      %105 = vector.load %arg6[%c112, %c0_89] : memref<128x128xbf16, #tpu.memory_space<vmem>>, vector<8x128xbf16>
      tpu.vector_store %arg6[%c112, %c0_89], %104 {strides = array<i32>} : memref<128x128xbf16, #tpu.memory_space<vmem>>, vector<8x128xbf16>,
      %c0_90 = arith.constant 0 : index
      %c3_91 = arith.constant 3 : index
      %c0_92 = arith.constant 0 : index
      %c10_93 = arith.constant 10 : index
      %106 = vector.load %arg2[%c0_90, %c3_91, %c0_92, %c10_93] : memref<1x4x8x256xbf16, #tpu.memory_space<vmem>>, vector<1x1x8x128xbf16>
      %107 = vector.shape_cast %106 : vector<1x1x8x128xbf16> to vector<8x128xbf16>
      %c120 = arith.constant 120 : index
      %c0_94 = arith.constant 0 : index
      %108 = vector.load %arg6[%c120, %c0_94] : memref<128x128xbf16, #tpu.memory_space<vmem>>, vector<8x128xbf16>
      tpu.vector_store %arg6[%c120, %c0_94], %107 {strides = array<i32>} : memref<128x128xbf16, #tpu.memory_space<vmem>>, vector<8x128xbf16>,
    } else {
    }
    %c0 = arith.constant 0 : index
    %c0_1 = arith.constant 0 : index
    %3 = vector.load %arg3[%c0, %c0_1] : memref<8x128xbf16, #tpu.memory_space<vmem>>, vector<8x128xbf16>
    %c0_2 = arith.constant 0 : index
    %c0_3 = arith.constant 0 : index
    %4 = vector.load %arg6[%c0_2, %c0_3] : memref<128x128xbf16, #tpu.memory_space<vmem>>, vector<128x128xbf16>
    %cst = arith.constant dense<0.000000e+00> : vector<8x128xf32>
    %5 = tpu.matmul %3, %4, %cst {dimension_numbers = #tpu.dot_dimension_numbers<[1], [0], [0], [1], [0, 0, 1, 1], [], []>} : vector<8x128xbf16>, vector<128x128xbf16>, vector<8x128xf32> -> vector<8x128xf32>
    %6 = tpu.iota {dimensions = array<i32: 1>} : vector<1x128xi32>
    %c9_i32 = arith.constant 9 : i32
    %c0_i32_4 = arith.constant 0 : i32
    %7 = arith.cmpi eq, %c9_i32, %c0_i32_4 : i32
    %c1_i32 = arith.constant 1 : i32
    %8 = arith.select %7, %c1_i32, %c9_i32 : i32
    %9 = vector.broadcast %8 : i32 to vector<1x128xi32>
    %10 = arith.remsi %6, %9 : vector<1x128xi32>
    %c0_i32_5 = arith.constant 0 : i32
    %11 = vector.broadcast %c0_i32_5 : i32 to vector<1x128xi32>
    %12 = arith.cmpi ne, %10, %11 : vector<1x128xi32>
    %c0_i32_6 = arith.constant 0 : i32
    %13 = vector.broadcast %c0_i32_6 : i32 to vector<1x128xi32>
    %14 = arith.cmpi slt, %10, %13 : vector<1x128xi32>
    %c0_i32_7 = arith.constant 0 : i32
    %15 = arith.cmpi slt, %8, %c0_i32_7 : i32
    %16 = vector.broadcast %15 : i1 to vector<1x128xi1>
    %17 = vector.broadcast %16 : vector<1x128xi1> to vector<1x128xi1>
    %18 = arith.xori %14, %17 : vector<1x128xi1>
    %19 = arith.andi %18, %12 : vector<1x128xi1>
    %20 = vector.broadcast %8 : i32 to vector<1x128xi32>
    %21 = arith.addi %10, %20 : vector<1x128xi32>
    %22 = arith.select %19, %21, %10 : vector<1x128xi1>, vector<1x128xi32>
    %c8_i32 = arith.constant 8 : i32
    %23 = vector.broadcast %c8_i32 : i32 to vector<1x128xi32>
    %24 = arith.cmpi slt, %22, %23 : vector<1x128xi32>
    %c72_i32 = arith.constant 72 : i32
    %25 = vector.broadcast %c72_i32 : i32 to vector<1x128xi32>
    %26 = arith.cmpi slt, %6, %25 : vector<1x128xi32>
    %27 = arith.andi %24, %26 : vector<1x128xi1>
    %28 = arith.extui %27 : vector<1x128xi1> to vector<1x128xi32>
    %29 = arith.sitofp %28 : vector<1x128xi32> to vector<1x128xf32>
    %30 = vector.broadcast %29 : vector<1x128xf32> to vector<8x128xf32>
    %31 = arith.mulf %5, %30 : vector<8x128xf32>
    %cst_8 = arith.constant dense<0.000000e+00> : vector<8xf32>
    %32 = vector.multi_reduction <add>, %31, %cst_8 [1] : vector<8x128xf32> to vector<8xf32>
    %33 = vector.shape_cast %32 : vector<8xf32> to vector<8x1xf32>
    %34 = arith.mulf %31, %5 : vector<8x128xf32>
    %cst_9 = arith.constant dense<0.000000e+00> : vector<8xf32>
    %35 = vector.multi_reduction <add>, %34, %cst_9 [1] : vector<8x128xf32> to vector<8xf32>
    %36 = vector.shape_cast %35 : vector<8xf32> to vector<8x1xf32>
    %cst_10 = arith.constant 1.562500e-02 : f32
    %37 = vector.broadcast %cst_10 : f32 to vector<8x1xf32>
    %38 = arith.mulf %33, %37 : vector<8x1xf32>
    %cst_11 = arith.constant 1.562500e-02 : f32
    %39 = vector.broadcast %cst_11 : f32 to vector<8x1xf32>
    %40 = arith.mulf %36, %39 : vector<8x1xf32>
    %41 = arith.mulf %38, %38 : vector<8x1xf32>
    %42 = arith.subf %40, %41 : vector<8x1xf32>
    %cst_12 = arith.constant 0.000000e+00 : f32
    %43 = vector.broadcast %cst_12 : f32 to vector<8x1xf32>
    %44 = arith.maximumf %42, %43 : vector<8x1xf32>
    %45 = vector.broadcast %38 : vector<8x1xf32> to vector<8x128xf32>
    %46 = arith.subf %5, %45 : vector<8x128xf32>
    %cst_13 = arith.constant 9.99999974E-6 : f32
    %47 = vector.broadcast %cst_13 : f32 to vector<8x1xf32>
    %48 = arith.addf %44, %47 : vector<8x1xf32>
    %49 = math.rsqrt %48 : vector<8x1xf32>
    %50 = vector.broadcast %49 : vector<8x1xf32> to vector<8x128xf32>
    %51 = arith.mulf %46, %50 : vector<8x128xf32>
    %cst_14 = arith.constant 0.000000e+00 : f32
    %52 = vector.broadcast %cst_14 : f32 to vector<8x128xf32>
    %53 = arith.cmpf oge, %51, %52 : vector<8x128xf32>
    %cst_15 = arith.constant 2.000000e-01 : f32
    %54 = vector.broadcast %cst_15 : f32 to vector<8x128xf32>
    %55 = arith.mulf %54, %51 : vector<8x128xf32>
    %56 = arith.select %53, %51, %55 : vector<8x128xi1>, vector<8x128xf32>
    %57 = arith.truncf %56 : vector<8x128xf32> to vector<8x128xbf16>
    %c0_16 = arith.constant 0 : index
    %c0_17 = arith.constant 0 : index
    %c0_18 = arith.constant 0 : index
    %58 = vector.load %arg5[%c0_16, %c0_17, %c0_18] : memref<1x8x128xbf16, #tpu.memory_space<vmem>>, vector<1x8x128xbf16>
    %59 = vector.shape_cast %58 : vector<1x8x128xbf16> to vector<8x128xbf16>
    %60 = vector.shape_cast %57 : vector<8x128xbf16> to vector<1x8x128xbf16>
    tpu.vector_store %arg5[%c0_16, %c0_17, %c0_18], %60 {strides = array<i32>} : memref<1x8x128xbf16, #tpu.memory_space<vmem>>, vector<1x8x128xbf16>,
    return
  }
  func.func @transform_0(%arg0: i32, %arg1: i32) -> (i32, i32, i32, i32) {
    %c0_i32 = arith.constant 0 : i32
    %c0_i32_0 = arith.constant 0 : i32
    %c0_i32_1 = arith.constant 0 : i32
    %c0_i32_2 = arith.constant 0 : i32
    return %arg0, %c0_i32, %c0_i32_0, %c0_i32_1 : i32, i32, i32, i32
  }
  func.func @transform_1(%arg0: i32, %arg1: i32) -> (i32, i32) {
    %c0_i32 = arith.constant 0 : i32
    %c0_i32_0 = arith.constant 0 : i32
    return %arg1, %c0_i32 : i32, i32
  }
  func.func @transform_2(%arg0: i32, %arg1: i32) -> (i32, i32) {
    %c0_i32 = arith.constant 0 : i32
    %c0_i32_0 = arith.constant 0 : i32
    return %arg1, %c0_i32 : i32, i32
  }
  func.func @transform_3(%arg0: i32, %arg1: i32) -> (i32, i32, i32) {
    %c0_i32 = arith.constant 0 : i32
    %c0_i32_0 = arith.constant 0 : i32
    return %arg0, %arg1, %c0_i32 : i32, i32, i32
  }
}

</mosaic_0001>

<llo_original>
// kernel: dnet_conv_block.1
$region0: #{dnet_conv_block.1}
  #allocation0 [shape = 'u32[]', space=smem, size = 0x4, offset = 0x4, fixed_abs, tag = 'smem constant byte address 0x4 - core index']
  #allocation1 [shape = 'u32[144,128]{1,0:T(1,128)}', space=vmem, size = 0x12000, scoped, tag = 'internal scratch']
  #allocation2 [shape = 'bf16[128,128]{1,0:T(16,128)(2,1)}', space=vmem, size = 0x8000, scoped, tag = 'scratch operand']
  %s0 = inlined_call_operand.vmem [shape: bf16[2,4,8,256], index: 0, kind: input, shape index: {}]
  %s1 = inlined_call_operand.vmem [shape: bf16[8,128], index: 1, kind: input, shape index: {}]
  %s2 = inlined_call_operand.vmem [shape: f32[8,1], index: 2, kind: input, shape index: {}]
  %s3 = inlined_call_operand.vmem [shape: bf16[2,8,128], index: 3, kind: output, shape index: {}]
  %s4 = sld [smem:[#allocation0]]
  $region49: #{dnet_conv_block.1} parent=0
    _
  %s6 = ssub.s32 1, %s4
  %s7 = scalar_select 0, %s6, %s4
  loop: start=0, step=1, limit=4
  $region2: #{dnet_conv_block.1} parent=0 // loop_pre_header
    _
  $region3: #{dnet_conv_block.1} parent=0 // loop_header
    %s9 = sphi 0, %s13
    %p10 = scmp.ge.s32.totalorder %s9, 4
    %s16 = sphi 0, %s28
    %s17 = sphi 0, %s24
    %s18 = sphi 0, %s16
    %s19 = sphi 0, %s17
    %s20 = sphi 0, %s18
    %s21 = sphi 0, %s19
    %s31 = sphi 0, %s33
    %s34 = sphi 0, %s31
    %s35 = sphi 0, %s34
    %s51 = sphi 0, %s35
    %s57 = sphi 0, %s59
    %s60 = sphi 0, %s57
    %s61 = sphi 0, %s60
    %s77 = sphi 0, %s61
    %s83 = sphi 0, %s85
    %s86 = sphi 0, %s83
    %s87 = sphi 0, %s86
    %s103 = sphi 0, %s87
    %s111 = sphi 0, %s113
    %s114 = sphi 0, %s111
    %s115 = sphi 0, %s114
    %s131 = sphi 0, %s115
  $region4: #{dnet_conv_block.1} parent=0 // loop_header_branch
    %12 = sbr.rel (%p10) target = $region8
  $region5: #{dnet_conv_block.1} parent=0 // loop_body
    %s14 = ssub.s32 %s9, 1
    %s15 = ssub.s32 %s9, 2
    %s22 = sadd.s32 1, %s17
    %p23 = scmp.ge.s32.totalorder %s22, 1
    %s24 = scalar_select %p23, 0, %s22
    %s25 = sadd.s32 1, %s16
    %s26 = scalar_select %p23, %s25, %s16
    %p27 = scmp.ge.s32.totalorder %s26, 2
    %s28 = scalar_select %p27, 0, %s26
    %s29 = ssub.s32 %s16, %s28
    %p30 = scmp.eq.s32.totalorder %s29, 0
    %s32 = sadd.s32 %s31, 1
    %s33 = scalar_select %p30, %s31, %s32
    %p36 = pneg %p30
    %p37 = scmp.eq.s32.totalorder %s9, 1
    %p38 = por %p36, %p37
    %p39 = scmp.ne.s32.totalorder %s31, %s34
    %p40 = scmp.eq.s32.totalorder %s9, 0
    %p41 = por %p39, %p40
    %p42 = scmp.ne.s32.totalorder %s31, %s34
    %p43 = scmp.eq.s32.totalorder %s14, 1
    %p44 = por %p42, %p43
    %p45 = scmp.ne.s32.totalorder %s34, %s35
    %p46 = scmp.eq.s32.totalorder %s14, 0
    %p47 = por %p45, %p46
    %p48 = scmp.ne.s32.totalorder %s34, %s35
    %p49 = scmp.eq.s32.totalorder %s15, 1
    %p50 = por %p48, %p49
    %p52 = scmp.ne.s32.totalorder %s35, %s51
    %p53 = scmp.eq.s32.totalorder %s15, 0
    %p54 = por %p52, %p53
    %s55 = ssub.s32 %s17, %s24
    %p56 = scmp.eq.s32.totalorder %s55, 0
    %s58 = sadd.s32 %s57, 1
    %s59 = scalar_select %p56, %s57, %s58
    %p62 = pneg %p56
    %p63 = scmp.eq.s32.totalorder %s9, 1
    %p64 = por %p62, %p63
    %p65 = scmp.ne.s32.totalorder %s57, %s60
    %p66 = scmp.eq.s32.totalorder %s9, 0
    %p67 = por %p65, %p66
    %p68 = scmp.ne.s32.totalorder %s57, %s60
    %p69 = scmp.eq.s32.totalorder %s14, 1
    %p70 = por %p68, %p69
    %p71 = scmp.ne.s32.totalorder %s60, %s61
    %p72 = scmp.eq.s32.totalorder %s14, 0
    %p73 = por %p71, %p72
    %p74 = scmp.ne.s32.totalorder %s60, %s61
    %p75 = scmp.eq.s32.totalorder %s15, 1
    %p76 = por %p74, %p75
    %p78 = scmp.ne.s32.totalorder %s61, %s77
    %p79 = scmp.eq.s32.totalorder %s15, 0
    %p80 = por %p78, %p79
    %s81 = ssub.s32 %s17, %s24
    %p82 = scmp.eq.s32.totalorder %s81, 0
    %s84 = sadd.s32 %s83, 1
    %s85 = scalar_select %p82, %s83, %s84
    %p88 = pneg %p82
    %p89 = scmp.eq.s32.totalorder %s9, 1
    %p90 = por %p88, %p89
    %p91 = scmp.ne.s32.totalorder %s83, %s86
    %p92 = scmp.eq.s32.totalorder %s9, 0
    %p93 = por %p91, %p92
    %p94 = scmp.ne.s32.totalorder %s83, %s86
    %p95 = scmp.eq.s32.totalorder %s14, 1
    %p96 = por %p94, %p95
    %p97 = scmp.ne.s32.totalorder %s86, %s87
    %p98 = scmp.eq.s32.totalorder %s14, 0
    %p99 = por %p97, %p98
    %p100 = scmp.ne.s32.totalorder %s86, %s87
    %p101 = scmp.eq.s32.totalorder %s15, 1
    %p102 = por %p100, %p101
    %p104 = scmp.ne.s32.totalorder %s87, %s103
    %p105 = scmp.eq.s32.totalorder %s15, 0
    %p106 = por %p104, %p105
    %s107 = ssub.s32 %s16, %s28
    %s108 = ssub.s32 %s17, %s24
    %s109 = sor.u32 %s107, %s108
    %p110 = scmp.eq.s32.totalorder %s109, 0
    %s112 = sadd.s32 %s111, 1
    %s113 = scalar_select %p110, %s111, %s112
    %p116 = pneg %p110
    %p117 = scmp.eq.s32.totalorder %s9, 1
    %p118 = por %p116, %p117
    %p119 = scmp.ne.s32.totalorder %s111, %s114
    %p120 = scmp.eq.s32.totalorder %s9, 0
    %p121 = por %p119, %p120
    %p122 = scmp.ne.s32.totalorder %s111, %s114
    %p123 = scmp.eq.s32.totalorder %s14, 1
    %p124 = por %p122, %p123
    %p125 = scmp.ne.s32.totalorder %s114, %s115
    %p126 = scmp.eq.s32.totalorder %s14, 0
    %p127 = por %p125, %p126
    %p128 = scmp.ne.s32.totalorder %s114, %s115
    %p129 = scmp.eq.s32.totalorder %s15, 1
    %p130 = por %p128, %p129
    %p132 = scmp.ne.s32.totalorder %s115, %s131
    %p133 = scmp.eq.s32.totalorder %s15, 0
    %p134 = por %p132, %p133
    %p135 = scmp.le.s32.totalorder 1, %s9
    %p136 = scmp.lt.s32.totalorder %s9, 3
    %p137 = pnand %p135, %p136
    %p138 = pneg %p137
    // Predicated region
    $region9: #{dnet_conv_block.1} parent=5 // pred_check
      _
    $region10: #{dnet_conv_block.1} parent=5 // pred_check_branch
      %140 = sbr.rel (%p137) target = $region12
    $region11: #{dnet_conv_block.1} parent=5 // pred_region
      %s141 = ssub.s32 %s9, 1
      // Predicated region
      $region13: #{dnet_conv_block.1} parent=11 // pred_check
        %p142 = pneg %p73
      $region14: #{dnet_conv_block.1} parent=11 // pred_check_branch
        %144 = sbr.rel (%p142) target = $region16
      $region15: #{dnet_conv_block.1} parent=11 // pred_region
        %p145 = scmp.lt.s32.totalorder %s19, 0
        %s146 = scalar_select %p145, %s19, 0
        %s147 = smul.addr %s146, 4
        %s148 = scalar_lea.vmem %s1, %s147
      $region16: #{dnet_conv_block.1} parent=11 // pred_fallthru
        _
      // Predicated region
      $region17: #{dnet_conv_block.1} parent=11 // pred_check
        %p149 = pneg %p99
      $region18: #{dnet_conv_block.1} parent=11 // pred_check_branch
        %151 = sbr.rel (%p149) target = $region20
      $region19: #{dnet_conv_block.1} parent=11 // pred_region
        %p152 = scmp.lt.s32.totalorder %s19, 0
        %s153 = scalar_select %p152, %s19, 0
        %s154 = smul.addr %s153, 8
        %s155 = scalar_lea.vmem %s2, %s154
      $region20: #{dnet_conv_block.1} parent=11 // pred_fallthru
        _
    $region12: #{dnet_conv_block.1} parent=5 // pred_fallthru
      _
    %p156 = scmp.lt.s32.totalorder %s9, 2
    // Predicated region
    $region21: #{dnet_conv_block.1} parent=5 // pred_check
      %p157 = pneg %p156
    $region22: #{dnet_conv_block.1} parent=5 // pred_check_branch
      %159 = sbr.rel (%p157) target = $region24
    $region23: #{dnet_conv_block.1} parent=5 // pred_region
      // Predicated region
      $region25: #{dnet_conv_block.1} parent=23 // pred_check
        %p160 = pneg %p41
      $region26: #{dnet_conv_block.1} parent=23 // pred_check_branch
        %162 = sbr.rel (%p160) target = $region28
      $region27: #{dnet_conv_block.1} parent=23 // pred_region
        %p163 = scmp.lt.s32.totalorder %s16, 1
        %s164 = scalar_select %p163, %s16, 1
        %s165 = smul.addr %s164, 8
        %s166 = smul.addr %s165, 4
        %s167 = scalar_lea.vmem %s0, %s166
      $region28: #{dnet_conv_block.1} parent=23 // pred_fallthru
        _
    $region24: #{dnet_conv_block.1} parent=5 // pred_fallthru
      _
    %p168 = scmp.le.s32.totalorder 1, %s9
    %p169 = scmp.lt.s32.totalorder %s9, 3
    %p170 = pnand %p168, %p169
    %p171 = pneg %p170
    // Predicated region
    $region29: #{dnet_conv_block.1} parent=5 // pred_check
      _
    $region30: #{dnet_conv_block.1} parent=5 // pred_check_branch
      %173 = sbr.rel (%p170) target = $region32
    $region31: #{dnet_conv_block.1} parent=5 // pred_region
      %s174 = ssub.s32 %s9, 1
      %p175 = scmp.lt.s32.totalorder %s18, 1
      %s176 = scalar_select %p175, %s18, 1
      %s177 = smul.addr %s176, 8
      %s178 = smul.addr %s177, 4
      %s179 = scalar_lea.vmem %s0, %s178
      %p180 = pneg %p47
      %p181 = pneg %p44
      %p182 = scmp.lt.s32.totalorder %s19, 0
      %s183 = scalar_select %p182, %s19, 0
      %s184 = smul.addr %s183, 4
      %s185 = scalar_lea.vmem %s1, %s184
      %p186 = pneg %p73
      %p187 = pneg %p70
      %p188 = scmp.lt.s32.totalorder %s19, 0
      %s189 = scalar_select %p188, %s19, 0
      %s190 = smul.addr %s189, 8
      %s191 = scalar_lea.vmem %s2, %s190
      %p192 = pneg %p99
      %p193 = pneg %p96
      %p194 = pneg %p127
      %p195 = pneg %p124
      %p196 = scmp.lt.s32.totalorder %s18, 1
      %s197 = scalar_select %p196, %s18, 1
      %p198 = scmp.lt.s32.totalorder %s19, 0
      %s199 = scalar_select %p198, %s19, 0
      %s200 = sadd.s32 %s199, %s197
      %s201 = smul.addr %s200, 4
      %s202 = scalar_lea.vmem %s3, %s201
      %p203 = scmp.lt.s32.totalorder %s18, 1
      %s204 = scalar_select %p203, %s18, 1
      %s205 = smul.addr %s204, 8
      %s206 = smul.addr %s205, 4
      %s207 = scalar_lea.vmem %s0, %s206
      %p208 = scmp.lt.s32.totalorder %s19, 0
      %s209 = scalar_select %p208, %s19, 0
      %s210 = smul.addr %s209, 4
      %s211 = scalar_lea.vmem %s1, %s210
      %p212 = scmp.lt.s32.totalorder %s19, 0
      %s213 = scalar_select %p212, %s19, 0
      %s214 = smul.addr %s213, 8
      %s215 = scalar_lea.vmem %s2, %s214
      %p216 = scmp.lt.s32.totalorder %s18, 1
      %s217 = scalar_select %p216, %s18, 1
      %p218 = scmp.lt.s32.totalorder %s19, 0
      %s219 = scalar_select %p218, %s19, 0
      %s220 = sadd.s32 %s219, %s217
      %s221 = smul.addr %s220, 4
      %s222 = scalar_lea.vmem %s3, %s221
      %p224 = scmp.eq.s32.totalorder %s19, 0
      // Predicated region
      $region33: #{dnet_conv_block.1} parent=31 // pred_check
        %p225 = pneg %p224
      $region34: #{dnet_conv_block.1} parent=31 // pred_check_branch
        %227 = sbr.rel (%p225) target = $region36
      $region35: #{dnet_conv_block.1} parent=31 // pred_region
        %v228 = vld [vmem:[%s207] sm:$0xf]
        %229 = vst [vmem:[#allocation2] sm:$0xf] %v228
        %s230 = scalar_lea.vmem %s207, 8
        %v231 = vld [vmem:[%s230] sm:$0xf]
        %v233 = vunpack.c.l.b16 %v231
        %v234 = vpack.c.b16 %v233, %v233
        %236 = vst [vmem:[#allocation2] sm:$0xf0] %v234
        %v237 = vld [vmem:[%s207] sm:$0xff]
        %v239 = vunpack.c.l.b16 %v237
        %v240 = vunpack.c.h.b16 %v237
        %v241 = vpack.c.b16 %v239, %v239
        %v242 = vpack.c.b16 %v240, %v240
        %243 = vrot.lane.b32.xlu0 %v241, 127
        %v244 = vpop.permute.xlu0 %243
        %245 = vrot.lane.b32.xlu0 %v242, 127
        %v246 = vpop.permute.xlu0 %245
        %vm247 = vcmask 1039360
        %v248 = vsel %vm247, %v244, %v246
        %250 = vst [vmem:[#allocation2 + $0x8] sm:$0xf] %v248
        %v251 = vld [vmem:[%s230] sm:$0xff]
        %v253 = vunpack.c.l.b16 %v251
        %v254 = vunpack.c.h.b16 %v251
        %v255 = vpack.c.b16 %v253, %v253
        %v256 = vpack.c.b16 %v254, %v254
        %257 = vrot.lane.b32.xlu0 %v255, 127
        %v258 = vpop.permute.xlu0 %257
        %259 = vrot.lane.b32.xlu0 %v256, 127
        %v260 = vpop.permute.xlu0 %259
        %v261 = vsel %vm247, %v258, %v260
        %263 = vst [vmem:[#allocation2 + $0x8] sm:$0xf0] %v261
        %s264 = scalar_lea.vmem %s207, 16
        %v265 = vld [vmem:[%s264] sm:$0xf]
        %266 = vst [vmem:[#allocation2 + $0x10] sm:$0xf] %v265
        %s267 = scalar_lea.vmem %s207, 24
        %v268 = vld [vmem:[%s267] sm:$0xf]
        %v270 = vunpack.c.l.b16 %v268
        %v271 = vpack.c.b16 %v270, %v270
        %273 = vst [vmem:[#allocation2 + $0x10] sm:$0xf0] %v271
        %v274 = vld [vmem:[%s264] sm:$0xff]
        %v276 = vunpack.c.l.b16 %v274
        %v277 = vunpack.c.h.b16 %v274
        %v278 = vpack.c.b16 %v276, %v276
        %v279 = vpack.c.b16 %v277, %v277
        %280 = vrot.lane.b32.xlu0 %v278, 127
        %v281 = vpop.permute.xlu0 %280
        %282 = vrot.lane.b32.xlu0 %v279, 127
        %v283 = vpop.permute.xlu0 %282
        %v284 = vsel %vm247, %v281, %v283
        %286 = vst [vmem:[#allocation2 + $0x18] sm:$0xf] %v284
        %v287 = vld [vmem:[%s267] sm:$0xff]
        %v289 = vunpack.c.l.b16 %v287
        %v290 = vunpack.c.h.b16 %v287
        %v291 = vpack.c.b16 %v289, %v289
        %v292 = vpack.c.b16 %v290, %v290
        %293 = vrot.lane.b32.xlu0 %v291, 127
        %v294 = vpop.permute.xlu0 %293
        %295 = vrot.lane.b32.xlu0 %v292, 127
        %v296 = vpop.permute.xlu0 %295
        %v297 = vsel %vm247, %v294, %v296
        %299 = vst [vmem:[#allocation2 + $0x18] sm:$0xf0] %v297
        %v300 = vld [vmem:[%s207] sm:$0xff]
        %v302 = vunpack.c.l.b16 %v300
        %v303 = vunpack.c.h.b16 %v300
        %v304 = vpack.c.b16 %v302, %v302
        %v305 = vpack.c.b16 %v303, %v303
        %306 = vrot.lane.b32.xlu0 %v304, 119
        %v307 = vpop.permute.xlu0 %306
        %308 = vrot.lane.b32.xlu0 %v305, 119
        %v309 = vpop.permute.xlu0 %308
        %vm310 = vcmask 973824
        %v311 = vsel %vm310, %v307, %v309
        %313 = vst [vmem:[#allocation2 + $0x20] sm:$0xf] %v311
        %v314 = vld [vmem:[%s230] sm:$0xff]
        %v316 = vunpack.c.l.b16 %v314
        %v317 = vunpack.c.h.b16 %v314
        %v318 = vpack.c.b16 %v316, %v316
        %v319 = vpack.c.b16 %v317, %v317
        %320 = vrot.lane.b32.xlu0 %v318, 119
        %v321 = vpop.permute.xlu0 %320
        %322 = vrot.lane.b32.xlu0 %v319, 119
        %v323 = vpop.permute.xlu0 %322
        %v324 = vsel %vm310, %v321, %v323
        %326 = vst [vmem:[#allocation2 + $0x20] sm:$0xf0] %v324
        %v327 = vld [vmem:[%s207] sm:$0xff]
        %v329 = vunpack.c.l.b16 %v327
        %v330 = vunpack.c.h.b16 %v327
        %v331 = vpack.c.b16 %v329, %v329
        %v332 = vpack.c.b16 %v330, %v330
        %333 = vrot.lane.b32.xlu0 %v331, 118
        %v334 = vpop.permute.xlu0 %333
        %335 = vrot.lane.b32.xlu0 %v332, 118
        %v336 = vpop.permute.xlu0 %335
        %vm337 = vcmask 965632
        %v338 = vsel %vm337, %v334, %v336
        %340 = vst [vmem:[#allocation2 + $0x28] sm:$0xf] %v338
        %v341 = vld [vmem:[%s230] sm:$0xff]
        %v343 = vunpack.c.l.b16 %v341
        %v344 = vunpack.c.h.b16 %v341
        %v345 = vpack.c.b16 %v343, %v343
        %v346 = vpack.c.b16 %v344, %v344
        %347 = vrot.lane.b32.xlu0 %v345, 118
        %v348 = vpop.permute.xlu0 %347
        %349 = vrot.lane.b32.xlu0 %v346, 118
        %v350 = vpop.permute.xlu0 %349
        %v351 = vsel %vm337, %v348, %v350
        %353 = vst [vmem:[#allocation2 + $0x28] sm:$0xf0] %v351
        %v354 = vld [vmem:[%s264] sm:$0xff]
        %v356 = vunpack.c.l.b16 %v354
        %v357 = vunpack.c.h.b16 %v354
        %v358 = vpack.c.b16 %v356, %v356
        %v359 = vpack.c.b16 %v357, %v357
        %360 = vrot.lane.b32.xlu0 %v358, 119
        %v361 = vpop.permute.xlu0 %360
        %362 = vrot.lane.b32.xlu0 %v359, 119
        %v363 = vpop.permute.xlu0 %362
        %v364 = vsel %vm310, %v361, %v363
        %366 = vst [vmem:[#allocation2 + $0x30] sm:$0xf] %v364
        %v367 = vld [vmem:[%s267] sm:$0xff]
        %v369 = vunpack.c.l.b16 %v367
        %v370 = vunpack.c.h.b16 %v367
        %v371 = vpack.c.b16 %v369, %v369
        %v372 = vpack.c.b16 %v370, %v370
        %373 = vrot.lane.b32.xlu0 %v371, 119
        %v374 = vpop.permute.xlu0 %373
        %375 = vrot.lane.b32.xlu0 %v372, 119
        %v376 = vpop.permute.xlu0 %375
        %v377 = vsel %vm310, %v374, %v376
        %379 = vst [vmem:[#allocation2 + $0x30] sm:$0xf0] %v377
        %v380 = vld [vmem:[%s264] sm:$0xff]
        %v382 = vunpack.c.l.b16 %v380
        %v383 = vunpack.c.h.b16 %v380
        %v384 = vpack.c.b16 %v382, %v382
        %v385 = vpack.c.b16 %v383, %v383
        %386 = vrot.lane.b32.xlu0 %v384, 118
        %v387 = vpop.permute.xlu0 %386
        %388 = vrot.lane.b32.xlu0 %v385, 118
        %v389 = vpop.permute.xlu0 %388
        %v390 = vsel %vm337, %v387, %v389
        %392 = vst [vmem:[#allocation2 + $0x38] sm:$0xf] %v390
        %v393 = vld [vmem:[%s267] sm:$0xff]
        %v395 = vunpack.c.l.b16 %v393
        %v396 = vunpack.c.h.b16 %v393
        %v397 = vpack.c.b16 %v395, %v395
        %v398 = vpack.c.b16 %v396, %v396
        %399 = vrot.lane.b32.xlu0 %v397, 118
        %v400 = vpop.permute.xlu0 %399
        %401 = vrot.lane.b32.xlu0 %v398, 118
        %v402 = vpop.permute.xlu0 %401
        %v403 = vsel %vm337, %v400, %v402
        %405 = vst [vmem:[#allocation2 + $0x38] sm:$0xf0] %v403
      $region36: #{dnet_conv_block.1} parent=31 // pred_fallthru
        _
      %v406 = vld [vmem:[%s211] sm:$0xf]
      %v407 = vld [vmem:[#allocation2] sm:$0xff]
      %v408 = vld [vmem:[#allocation2 + $0x8] sm:$0xff]
      %v409 = vld [vmem:[#allocation2 + $0x10] sm:$0xff]
      %v410 = vld [vmem:[#allocation2 + $0x18] sm:$0xff]
      %v411 = vld [vmem:[#allocation2 + $0x20] sm:$0xff]
      %v412 = vld [vmem:[#allocation2 + $0x28] sm:$0xff]
      %v413 = vld [vmem:[#allocation2 + $0x30] sm:$0xff]
      %v414 = vld [vmem:[#allocation2 + $0x38] sm:$0xff]
      %415 = vmatprep.subr.bf16.mxu0 0
      %416 = vmatpush1.bf16.msra.mxu0 %v407
      %417 = vmatprep.subr.bf16.mxu0 0
      %418 = vmatpush1.bf16.msra.mxu0 %v408
      %419 = vmatprep.subr.bf16.mxu0 0
      %420 = vmatpush1.bf16.msra.mxu0 %v409
      %421 = vmatprep.subr.bf16.mxu0 0
      %422 = vmatpush1.bf16.msra.mxu0 %v410
      %423 = vmatprep.subr.bf16.mxu0 0
      %424 = vmatpush1.bf16.msra.mxu0 %v411
      %425 = vmatprep.subr.bf16.mxu0 0
      %426 = vmatpush1.bf16.msra.mxu0 %v412
      %427 = vmatprep.subr.bf16.mxu0 0
      %428 = vmatpush1.bf16.msra.mxu0 %v413
      %429 = vmatprep.subr.bf16.mxu0 0
      %430 = vmatpush1.bf16.msra.mxu0 %v414
      %431 = vmatprep.subr.bf16.mxu0 0
      %432 = vmatpush1.bf16.msra.mxu0 0
      %433 = vmatprep.subr.bf16.mxu0 0
      %434 = vmatpush1.bf16.msra.mxu0 0
      %435 = vmatprep.subr.bf16.mxu0 0
      %436 = vmatpush1.bf16.msra.mxu0 0
      %437 = vmatprep.subr.bf16.mxu0 0
      %438 = vmatpush1.bf16.msra.mxu0 0
      %439 = vmatprep.subr.bf16.mxu0 0
      %440 = vmatpush1.bf16.msra.mxu0 0
      %441 = vmatprep.subr.bf16.mxu0 0
      %442 = vmatpush1.bf16.msra.mxu0 0
      %443 = vmatprep.subr.bf16.mxu0 0
      %444 = vmatpush1.bf16.msra.mxu0 0
      %445 = vmatprep.subr.bf16.mxu0 0
      %446 = vmatpush1.bf16.msra.mxu0 0
      %447 = vmatprep.mubr.bf16.mxu0 0
      %448 = vmatmul.mubr.bf16.gmra.mrb[0].mxu0 %v406
      %v449 = vpop.f32.mrb[0].mxu0
      %v450 = vadd.f32 0.0, %v449
      %v451 = vpop.f32.mrb[0].mxu0
      %v452 = vpop.f32.mrb[0].mxu0
      %v453 = vpop.f32.mrb[0].mxu0
      %454 = vdwg.mxu0
      %v455 = vlaneseq
      %v456 = vand.u32 %v455, 127
      %vm457 = vcmp.lt.s32.totalorder %v456, 0
      %v458 = vsub.s32 0, %v456
      %v459 = vsel %vm457, %v458, %v456
      %v460 = vmul.u32.u64.compose %v459, 3817748708
      %v461 = vextract.low.u32 %v460
      %v462 = vextract.high.u32 %v460
      %v463 = vshrl.u32 %v462, 3
      %v464 = vmul.u32 %v463, 9
      %v465 = vsub.s32 %v459, %v464
      %v466 = vsub.s32 0, %v465
      %v467 = vsel %vm457, %v466, %v465
      %vm468 = vcmp.ne.s32.totalorder %v467, 0
      %vm469 = vcmp.lt.s32.totalorder %v467, 0
      %vm470 = vmand %vm469, %vm468
      %v471 = vadd.s32 %v467, 9
      %v472 = vsel %vm470, %v471, %v467
      %vm473 = vcmp.lt.s32.totalorder %v472, 8
      %vm474 = vcmp.lt.s32.totalorder %v456, 72
      %vm475 = vmand %vm473, %vm474
      %v476 = vsel %vm475, 1, 0
      %v477 = vcvt.s32.f32 %v476
      %v478 = vmul.f32 %v450, %v477
      %479 = vadd.xlane.f32.xlu0 %v478
      %v480 = vpop.xlane.xlu0 %479
      %v481 = vmul.f32 %v478, %v450
      %482 = vadd.xlane.f32.xlu0 %v481
      %v483 = vpop.xlane.xlu0 %482
      %v484 = vmul.f32 %v480, 0.015625
      %v485 = vmul.f32 %v483, 0.015625
      %v486 = vmul.f32 %v484, %v484
      %v487 = vsub.f32 %v485, %v486
      %v488 = vmax.f32 %v487, 0.0
      %v489 = vsub.f32 %v450, %v484
      %v490 = vadd.f32 %v488, 1e-05
      %v491 = vrsqrt.pop %v490
      %v492 = vmul.f32 %v489, %v491
      %vm493 = vcmp.ge.f32.partialorder %v492, 0.0
      %v494 = vmul.f32 %v492, 0.2
      %v495 = vsel %vm493, %v492, %v494
      %v496 = vpack.c.bf16 %v495, %v495
      %497 = vst [vmem:[%s222] sm:$0xf] %v496
      %p498 = scmp.lt.s32.totalorder %s18, 1
      %s499 = scalar_select %p498, %s18, 1
      %p500 = scmp.lt.s32.totalorder %s19, 0
      %s501 = scalar_select %p500, %s19, 0
      %s502 = sadd.s32 %s501, %s499
      %s503 = smul.addr %s502, 4
      %s504 = scalar_lea.vmem %s3, %s503
      // Predicated region
      $region37: #{dnet_conv_block.1} parent=31 // pred_check
        %p505 = pneg %p124
      $region38: #{dnet_conv_block.1} parent=31 // pred_check_branch
        %507 = sbr.rel (%p505) target = $region40
      $region39: #{dnet_conv_block.1} parent=31 // pred_region
        _
      $region40: #{dnet_conv_block.1} parent=31 // pred_fallthru
        _
    $region32: #{dnet_conv_block.1} parent=5 // pred_fallthru
      _
    %p508 = scmp.le.s32.totalorder 2, %s9
    // Predicated region
    $region41: #{dnet_conv_block.1} parent=5 // pred_check
      %p509 = pneg %p508
    $region42: #{dnet_conv_block.1} parent=5 // pred_check_branch
      %511 = sbr.rel (%p509) target = $region44
    $region43: #{dnet_conv_block.1} parent=5 // pred_region
      %s512 = ssub.s32 %s9, 2
      // Predicated region
      $region45: #{dnet_conv_block.1} parent=43 // pred_check
        %p513 = pneg %p130
      $region46: #{dnet_conv_block.1} parent=43 // pred_check_branch
        %515 = sbr.rel (%p513) target = $region48
      $region47: #{dnet_conv_block.1} parent=43 // pred_region
        %p516 = scmp.lt.s32.totalorder %s20, 1
        %s517 = scalar_select %p516, %s20, 1
        %p518 = scmp.lt.s32.totalorder %s21, 0
        %s519 = scalar_select %p518, %s21, 0
        %s520 = sadd.s32 %s519, %s517
        %s521 = smul.addr %s520, 4
        %s522 = scalar_lea.vmem %s3, %s521
      $region48: #{dnet_conv_block.1} parent=43 // pred_fallthru
        _
    $region44: #{dnet_conv_block.1} parent=5 // pred_fallthru
      _
  $region6: #{dnet_conv_block.1} parent=0 // loop_footer
    %s13 = sadd.s32 1, %s9
  $region7: #{dnet_conv_block.1} parent=0 // loop_footer_branch
    %8 = sbr.rel target = $region3
  $region8: #{dnet_conv_block.1} parent=0 // loop_exit
    _

</llo_original>
